<compile_context>
chip_gen: v5e
topology: v5e:2x2
jax: 0.10.0
libtpu: 0.0.40
codegen_flags: <defaults>
</compile_context>

<pallas_src>
import jax
import jax.numpy as jnp
from jax.experimental import pallas as pl
from jax.experimental.pallas import tpu as pltpu


def concat_table_kernel(x_ref, w1_ref, b1_ref, w2_ref, b2_ref, o1_ref, o2_ref):
    """Two channel-mix matmuls sharing one input tile.

    x_ref  : [C_in, TILE_M]  input tile (N*H*W rows on the lane axis)
    w1_ref : [C1, C_in]      layer1 1x1-conv weight
    b1_ref : [C1, 1]         layer1 bias
    w2_ref : [C2, C_in]      layer2 1x1-conv weight
    b2_ref : [C2, 1]         layer2 bias
    o1_ref : [C1, TILE_M]    layer1 output tile
    o2_ref : [C2, TILE_M]    layer2 output tile
    """
    x = x_ref[...]
    o1_ref[...] = (
        jnp.dot(w1_ref[...], x, preferred_element_type=jnp.float32) + b1_ref[...]
    ).astype(o1_ref.dtype)
    o2_ref[...] = (
        jnp.dot(w2_ref[...], x, preferred_element_type=jnp.float32) + b2_ref[...]
    ).astype(o2_ref.dtype)


def concat_table(x_nchw, w1, b1, w2, b2, *, tile_m=None):
    """ConcatTable.forward: returns [layer1(x), layer2(x)].

    x_nchw : [N, C_in, H, W]   (NCHW, PyTorch convention)
    w1     : [C_in, C1]        (1x1 conv weight, reshaped)
    b1     : [C1]
    w2     : [C_in, C2]
    b2     : [C2]
    """
    N, C, H, W = x_nchw.shape
    C1, C2 = w1.shape[1], w2.shape[1]
    M = H * W

    # Keep NCHW; merging H,W is a free (contiguous) reshape. M lands on lanes.
    x3d = x_nchw.reshape(N, C, M)

    w1t = w1.T                    # [C1, C_in]
    w2t = w2.T                    # [C2, C_in]
    b1c = b1.reshape(C1, 1)
    b2c = b2.reshape(C2, 1)

    # --- Tile selection --------------------------------------------------
    # Lane-aligned (multiple of 128), big enough to amortize the ~0.35 us
    # per-grid-step overhead, small enough that the double-buffered x tile +
    # both output tiles fit comfortably under the tightest scoped-VMEM default
    # (v5e: 16 MiB; v7x: 32 MiB scoped / 64 MiB physical).
    m_full = pl.cdiv(M, 128) * 128
    if tile_m is None:
        bytes_per_lane = 2 * (C + C1 + C2) * 4      # double-buffered f32 tiles
        vmem_budget = 12 * 1024 * 1024
        tile_m = (vmem_budget // bytes_per_lane) // 128 * 128
        tile_m = max(128, min(tile_m, 32768))
    else:
        tile_m = max(128, (int(tile_m) // 128) * 128)
    tile_m = min(tile_m, m_full)                     # never bigger than M (rounded)

    grid = (N, pl.cdiv(M, tile_m))                   # no padding: edge blocks masked

    y1, y2 = pl.pallas_call(
        concat_table_kernel,
        out_shape=(
            jax.ShapeDtypeStruct((N, C1, M), x_nchw.dtype),
            jax.ShapeDtypeStruct((N, C2, M), x_nchw.dtype),
        ),
        grid=grid,
        in_specs=[
            # x: one batch element, one M-tile per grid step (pipelined).
            pl.BlockSpec((None, C, tile_m), lambda n, m: (n, 0, m)),
            # weights / biases: full arrays, constant index_map -> VMEM-resident.
            pl.BlockSpec((C1, C), lambda n, m: (0, 0)),
            pl.BlockSpec((C1, 1), lambda n, m: (0, 0)),
            pl.BlockSpec((C2, C), lambda n, m: (0, 0)),
            pl.BlockSpec((C2, 1), lambda n, m: (0, 0)),
        ],
        out_specs=(
            pl.BlockSpec((None, C1, tile_m), lambda n, m: (n, 0, m)),
            pl.BlockSpec((None, C2, tile_m), lambda n, m: (n, 0, m)),
        ),
        compiler_params=pltpu.CompilerParams(
            dimension_semantics=("parallel", "parallel"),
            # Explicit limit with headroom so the 2-deep pipeline survives on
            # v5e (16 MiB scoped default); well under v7x's 64 MiB physical.
            vmem_limit_bytes=32 * 1024 * 1024,
        ),
    )(x3d, w1t, b1c, w2t, b2c)

    # Contiguous (free) reshapes back to NCHW.
    return [y1.reshape(N, C1, H, W), y2.reshape(N, C2, H, W)]


def _reference(x_nchw, w1, b1, w2, b2):
    """Pure-JAX reference: 1x1 conv == channel matmul."""
    x = jnp.transpose(x_nchw, (0, 2, 3, 1))  # NHWC
    y1 = jnp.einsum("nhwc,co->nhwo", x, w1) + b1
    y2 = jnp.einsum("nhwc,co->nhwo", x, w2) + b2
    return [jnp.transpose(y1, (0, 3, 1, 2)), jnp.transpose(y2, (0, 3, 1, 2))]


if __name__ == "__main__":
    key = jax.random.PRNGKey(0)
    kx, k1, k2, kb1, kb2 = jax.random.split(key, 5)

    N, C_in, H, W = 2, 4, 16, 16
    C1, C2 = 8, 16  # layer1: Conv2d(4, 8, 1); layer2: Conv2d(4, 16, 1)

    x = jax.random.normal(kx, (N, C_in, H, W), dtype=jnp.float32)
    # Deterministic kaiming-ish init for the two 1x1 convs (fan_in = C_in).
    w1 = jax.random.normal(k1, (C_in, C1), dtype=jnp.float32) * (2.0 / C_in) ** 0.5
    b1 = jax.random.normal(kb1, (C1,), dtype=jnp.float32) * 0.01
    w2 = jax.random.normal(k2, (C_in, C2), dtype=jnp.float32) * (2.0 / C_in) ** 0.5
    b2 = jax.random.normal(kb2, (C2,), dtype=jnp.float32) * 0.01

    out = concat_table(x, w1, b1, w2, b2)
    out = [jax.block_until_ready(o) for o in out]

    ref = _reference(x, w1, b1, w2, b2)
    assert len(out) == 2
    assert out[0].shape == (N, C1, H, W) and out[1].shape == (N, C2, H, W)
    for o, r in zip(out, ref):
        assert jnp.allclose(o, r, atol=1e-5, rtol=1e-5)

    print("KERNEL_OK")
</pallas_src>

<mosaic_0001>
module attributes {stable_mosaic.version = 11 : i64} {
  func.func @concat_table_kernel(%arg0: i32, %arg1: i32, %arg2: memref<1x4x256xf32, #tpu.memory_space<vmem>>, %arg3: memref<8x4xf32, #tpu.memory_space<vmem>>, %arg4: memref<8x1xf32, #tpu.memory_space<vmem>>, %arg5: memref<16x4xf32, #tpu.memory_space<vmem>>, %arg6: memref<16x1xf32, #tpu.memory_space<vmem>>, %arg7: memref<1x8x256xf32, #tpu.memory_space<vmem>>, %arg8: memref<1x16x256xf32, #tpu.memory_space<vmem>>) attributes {dimension_semantics = [#tpu.dimension_semantics<parallel>, #tpu.dimension_semantics<parallel>], iteration_bounds = array<i64: 2, 1>, scalar_prefetch = 0 : i64, scratch_operands = 0 : i64, tpu.core_type = #tpu.core_type<tc>, window_params = [{transform_indices = @transform_0, window_bounds = array<i64: 1, 4, 256>}, {pipeline_mode = #tpu.pipeline_mode<synchronous>, transform_indices = @transform_1, window_bounds = array<i64: 8, 4>}, {pipeline_mode = #tpu.pipeline_mode<synchronous>, transform_indices = @transform_2, window_bounds = array<i64: 8, 1>}, {pipeline_mode = #tpu.pipeline_mode<synchronous>, transform_indices = @transform_3, window_bounds = array<i64: 16, 4>}, {pipeline_mode = #tpu.pipeline_mode<synchronous>, transform_indices = @transform_4, window_bounds = array<i64: 16, 1>}, {transform_indices = @transform_5, window_bounds = array<i64: 1, 8, 256>}, {transform_indices = @transform_6, window_bounds = array<i64: 1, 16, 256>}]} {
    %c0 = arith.constant 0 : index
    %c0_0 = arith.constant 0 : index
    %c0_1 = arith.constant 0 : index
    %0 = vector.load %arg2[%c0, %c0_0, %c0_1] : memref<1x4x256xf32, #tpu.memory_space<vmem>>, vector<1x4x256xf32>
    %1 = vector.shape_cast %0 : vector<1x4x256xf32> to vector<4x256xf32>
    %c0_2 = arith.constant 0 : index
    %c0_3 = arith.constant 0 : index
    %2 = vector.load %arg3[%c0_2, %c0_3] : memref<8x4xf32, #tpu.memory_space<vmem>>, vector<8x4xf32>
    %cst = arith.constant dense<0.000000e+00> : vector<8x256xf32>
    %3 = tpu.matmul %2, %1, %cst {dimension_numbers = #tpu.dot_dimension_numbers<[1], [0], [0], [1], [0, 0, 1, 1], [], []>} : vector<8x4xf32>, vector<4x256xf32>, vector<8x256xf32> -> vector<8x256xf32>
    %c0_4 = arith.constant 0 : index
    %c0_5 = arith.constant 0 : index
    %4 = vector.load %arg4[%c0_4, %c0_5] : memref<8x1xf32, #tpu.memory_space<vmem>>, vector<8x1xf32>
    %5 = vector.broadcast %4 : vector<8x1xf32> to vector<8x256xf32>
    %6 = arith.addf %3, %5 : vector<8x256xf32>
    %c0_6 = arith.constant 0 : index
    %c0_7 = arith.constant 0 : index
    %c0_8 = arith.constant 0 : index
    %7 = vector.load %arg7[%c0_6, %c0_7, %c0_8] : memref<1x8x256xf32, #tpu.memory_space<vmem>>, vector<1x8x256xf32>
    %8 = vector.shape_cast %7 : vector<1x8x256xf32> to vector<8x256xf32>
    %9 = vector.shape_cast %6 : vector<8x256xf32> to vector<1x8x256xf32>
    tpu.vector_store %arg7[%c0_6, %c0_7, %c0_8], %9 {strides = array<i32>} : memref<1x8x256xf32, #tpu.memory_space<vmem>>, vector<1x8x256xf32>,
    %c0_9 = arith.constant 0 : index
    %c0_10 = arith.constant 0 : index
    %10 = vector.load %arg5[%c0_9, %c0_10] : memref<16x4xf32, #tpu.memory_space<vmem>>, vector<16x4xf32>
    %cst_11 = arith.constant dense<0.000000e+00> : vector<16x256xf32>
    %11 = tpu.matmul %10, %1, %cst_11 {dimension_numbers = #tpu.dot_dimension_numbers<[1], [0], [0], [1], [0, 0, 1, 1], [], []>} : vector<16x4xf32>, vector<4x256xf32>, vector<16x256xf32> -> vector<16x256xf32>
    %c0_12 = arith.constant 0 : index
    %c0_13 = arith.constant 0 : index
    %12 = vector.load %arg6[%c0_12, %c0_13] : memref<16x1xf32, #tpu.memory_space<vmem>>, vector<16x1xf32>
    %13 = vector.broadcast %12 : vector<16x1xf32> to vector<16x256xf32>
    %14 = arith.addf %11, %13 : vector<16x256xf32>
    %c0_14 = arith.constant 0 : index
    %c0_15 = arith.constant 0 : index
    %c0_16 = arith.constant 0 : index
    %15 = vector.load %arg8[%c0_14, %c0_15, %c0_16] : memref<1x16x256xf32, #tpu.memory_space<vmem>>, vector<1x16x256xf32>
    %16 = vector.shape_cast %15 : vector<1x16x256xf32> to vector<16x256xf32>
    %17 = vector.shape_cast %14 : vector<16x256xf32> to vector<1x16x256xf32>
    tpu.vector_store %arg8[%c0_14, %c0_15, %c0_16], %17 {strides = array<i32>} : memref<1x16x256xf32, #tpu.memory_space<vmem>>, vector<1x16x256xf32>,
    return
  }
  func.func @transform_0(%arg0: i32, %arg1: i32) -> (i32, i32, i32) {
    %c0_i32 = arith.constant 0 : i32
    %c0_i32_0 = arith.constant 0 : i32
    return %arg0, %c0_i32, %arg1 : i32, i32, i32
  }
  func.func @transform_1(%arg0: i32, %arg1: i32) -> (i32, i32) {
    %c0_i32 = arith.constant 0 : i32
    %c0_i32_0 = arith.constant 0 : i32
    %c0_i32_1 = arith.constant 0 : i32
    return %c0_i32, %c0_i32_0 : i32, i32
  }
  func.func @transform_2(%arg0: i32, %arg1: i32) -> (i32, i32) {
    %c0_i32 = arith.constant 0 : i32
    %c0_i32_0 = arith.constant 0 : i32
    %c0_i32_1 = arith.constant 0 : i32
    return %c0_i32, %c0_i32_0 : i32, i32
  }
  func.func @transform_3(%arg0: i32, %arg1: i32) -> (i32, i32) {
    %c0_i32 = arith.constant 0 : i32
    %c0_i32_0 = arith.constant 0 : i32
    %c0_i32_1 = arith.constant 0 : i32
    return %c0_i32, %c0_i32_0 : i32, i32
  }
  func.func @transform_4(%arg0: i32, %arg1: i32) -> (i32, i32) {
    %c0_i32 = arith.constant 0 : i32
    %c0_i32_0 = arith.constant 0 : i32
    %c0_i32_1 = arith.constant 0 : i32
    return %c0_i32, %c0_i32_0 : i32, i32
  }
  func.func @transform_5(%arg0: i32, %arg1: i32) -> (i32, i32, i32) {
    %c0_i32 = arith.constant 0 : i32
    %c0_i32_0 = arith.constant 0 : i32
    return %arg0, %c0_i32, %arg1 : i32, i32, i32
  }
  func.func @transform_6(%arg0: i32, %arg1: i32) -> (i32, i32, i32) {
    %c0_i32 = arith.constant 0 : i32
    %c0_i32_0 = arith.constant 0 : i32
    return %arg0, %c0_i32, %arg1 : i32, i32, i32
  }
}

</mosaic_0001>

<llo_original>
// kernel: tpu_custom_call.1
$region0: #{tpu_custom_call.1}
  #allocation0 [shape = 'u32[]', space=smem, size = 0x4, offset = 0x4, fixed_abs, tag = 'smem constant byte address 0x4 - core index']
  #allocation1 [shape = 'u32[72,128]{1,0:T(1,128)}', space=vmem, size = 0x9000, scoped, tag = 'internal scratch']
  %s0 = inlined_call_operand.vmem [shape: f32[2,4,256], index: 0, kind: input, shape index: {}]
  %s1 = inlined_call_operand.vmem [shape: f32[8,4], index: 1, kind: input, shape index: {}]
  %s2 = inlined_call_operand.vmem [shape: f32[8,1], index: 2, kind: input, shape index: {}]
  %s3 = inlined_call_operand.vmem [shape: f32[16,4], index: 3, kind: input, shape index: {}]
  %s4 = inlined_call_operand.vmem [shape: f32[16,1], index: 4, kind: input, shape index: {}]
  %s5 = inlined_call_operand.hbm [shape: f32[2,8,256], index: 5, kind: output, shape index: {0}]
  %s6 = inlined_call_operand.hbm [shape: f32[2,16,256], index: 6, kind: output, shape index: {1}]
  %7 = xla_tuple %s5, %s6
  %s8 = sld [smem:[#allocation0]]
  $region61: #{tpu_custom_call.1} parent=0
    _
  %s10 = ssub.s32 1, %s8
  %s11 = scalar_select 0, %s10, %s8
  $region1: #{tpu_custom_call.1} parent=0
    #allocation2 [shape = 'u8[16384]{0}', space=vmem, size = 0x4000, scoped, tag = 'output window, operand 0']
    #allocation3 [shape = 's32[2]{0}', space=sflag, size = 0x8, scoped, tag = 'scoped memory for tpu_custom_call.1']
    #allocation4 [shape = 'u8[32768]{0}', space=vmem, size = 0x8000, scoped, tag = 'output window, operand 1']
    #allocation5 [shape = 's32[2]{0}', space=sflag, size = 0x8, scoped, tag = 'scoped memory for tpu_custom_call.1']
    %12 = vsyncpa [#allocation3], 0
    %s13 = scalar_lea.sflag [#allocation3], 1
    %14 = vsyncpa %s13, 0
    %15 = vsyncpa [#allocation5], 0
    %s16 = scalar_lea.sflag [#allocation5], 1
    %17 = vsyncpa %s16, 0
    loop: start=0, step=1, limit=4
    $region2: #{tpu_custom_call.1} parent=1 // loop_pre_header
      _
    $region3: #{tpu_custom_call.1} parent=1 // loop_header
      %s19 = sphi 0, %s23
      %p20 = scmp.ge.s32.totalorder %s19, 4
      %s26 = sphi 0, %s38
      %s27 = sphi 0, %s34
      %s28 = sphi 0, %s26
      %s29 = sphi 0, %s27
      %s30 = sphi 0, %s28
      %s31 = sphi 0, %s29
      %s43 = sphi 0, %s45
      %s46 = sphi 0, %s43
      %s47 = sphi 0, %s46
      %s63 = sphi 0, %s47
      %s67 = sphi 0, %s67
      %s69 = sphi 0, %s67
      %s70 = sphi 0, %s69
      %s84 = sphi 0, %s70
      %s88 = sphi 0, %s88
      %s90 = sphi 0, %s88
      %s91 = sphi 0, %s90
      %s105 = sphi 0, %s91
      %s109 = sphi 0, %s109
      %s111 = sphi 0, %s109
      %s112 = sphi 0, %s111
      %s126 = sphi 0, %s112
      %s130 = sphi 0, %s130
      %s132 = sphi 0, %s130
      %s133 = sphi 0, %s132
      %s147 = sphi 0, %s133
      %s155 = sphi 0, %s157
      %s158 = sphi 0, %s155
      %s159 = sphi 0, %s158
      %s175 = sphi 0, %s159
      %s183 = sphi 0, %s185
      %s186 = sphi 0, %s183
      %s187 = sphi 0, %s186
      %s203 = sphi 0, %s187
    $region4: #{tpu_custom_call.1} parent=1 // loop_header_branch
      %22 = sbr.rel (%p20) target = $region8
    $region5: #{tpu_custom_call.1} parent=1 // loop_body
      %s24 = ssub.s32 %s19, 1
      %s25 = ssub.s32 %s19, 2
      %s32 = sadd.s32 1, %s27
      %p33 = scmp.ge.s32.totalorder %s32, 1
      %s34 = scalar_select %p33, 0, %s32
      %s35 = sadd.s32 1, %s26
      %s36 = scalar_select %p33, %s35, %s26
      %p37 = scmp.ge.s32.totalorder %s36, 2
      %s38 = scalar_select %p37, 0, %s36
      %s39 = ssub.s32 %s26, %s38
      %s40 = ssub.s32 %s27, %s34
      %s41 = sor.u32 %s39, %s40
      %p42 = scmp.eq.s32.totalorder %s41, 0
      %s44 = sadd.s32 %s43, 1
      %s45 = scalar_select %p42, %s43, %s44
      %p48 = pneg %p42
      %p49 = scmp.eq.s32.totalorder %s19, 1
      %p50 = por %p48, %p49
      %p51 = scmp.ne.s32.totalorder %s43, %s46
      %p52 = scmp.eq.s32.totalorder %s19, 0
      %p53 = por %p51, %p52
      %p54 = scmp.ne.s32.totalorder %s43, %s46
      %p55 = scmp.eq.s32.totalorder %s24, 1
      %p56 = por %p54, %p55
      %p57 = scmp.ne.s32.totalorder %s46, %s47
      %p58 = scmp.eq.s32.totalorder %s24, 0
      %p59 = por %p57, %p58
      %p60 = scmp.ne.s32.totalorder %s46, %s47
      %p61 = scmp.eq.s32.totalorder %s25, 1
      %p62 = por %p60, %p61
      %p64 = scmp.ne.s32.totalorder %s47, %s63
      %p65 = scmp.eq.s32.totalorder %s25, 0
      %p66 = por %p64, %p65
      %s68 = sadd.s32 %s67, 1
      %p71 = scmp.eq.s32.totalorder %s19, 1
      %p72 = scmp.ne.s32.totalorder %s67, %s69
      %p73 = scmp.eq.s32.totalorder %s19, 0
      %p74 = por %p72, %p73
      %p75 = scmp.ne.s32.totalorder %s67, %s69
      %p76 = scmp.eq.s32.totalorder %s24, 1
      %p77 = por %p75, %p76
      %p78 = scmp.ne.s32.totalorder %s69, %s70
      %p79 = scmp.eq.s32.totalorder %s24, 0
      %p80 = por %p78, %p79
      %p81 = scmp.ne.s32.totalorder %s69, %s70
      %p82 = scmp.eq.s32.totalorder %s25, 1
      %p83 = por %p81, %p82
      %p85 = scmp.ne.s32.totalorder %s70, %s84
      %p86 = scmp.eq.s32.totalorder %s25, 0
      %p87 = por %p85, %p86
      %s89 = sadd.s32 %s88, 1
      %p92 = scmp.eq.s32.totalorder %s19, 1
      %p93 = scmp.ne.s32.totalorder %s88, %s90
      %p94 = scmp.eq.s32.totalorder %s19, 0
      %p95 = por %p93, %p94
      %p96 = scmp.ne.s32.totalorder %s88, %s90
      %p97 = scmp.eq.s32.totalorder %s24, 1
      %p98 = por %p96, %p97
      %p99 = scmp.ne.s32.totalorder %s90, %s91
      %p100 = scmp.eq.s32.totalorder %s24, 0
      %p101 = por %p99, %p100
      %p102 = scmp.ne.s32.totalorder %s90, %s91
      %p103 = scmp.eq.s32.totalorder %s25, 1
      %p104 = por %p102, %p103
      %p106 = scmp.ne.s32.totalorder %s91, %s105
      %p107 = scmp.eq.s32.totalorder %s25, 0
      %p108 = por %p106, %p107
      %s110 = sadd.s32 %s109, 1
      %p113 = scmp.eq.s32.totalorder %s19, 1
      %p114 = scmp.ne.s32.totalorder %s109, %s111
      %p115 = scmp.eq.s32.totalorder %s19, 0
      %p116 = por %p114, %p115
      %p117 = scmp.ne.s32.totalorder %s109, %s111
      %p118 = scmp.eq.s32.totalorder %s24, 1
      %p119 = por %p117, %p118
      %p120 = scmp.ne.s32.totalorder %s111, %s112
      %p121 = scmp.eq.s32.totalorder %s24, 0
      %p122 = por %p120, %p121
      %p123 = scmp.ne.s32.totalorder %s111, %s112
      %p124 = scmp.eq.s32.totalorder %s25, 1
      %p125 = por %p123, %p124
      %p127 = scmp.ne.s32.totalorder %s112, %s126
      %p128 = scmp.eq.s32.totalorder %s25, 0
      %p129 = por %p127, %p128
      %s131 = sadd.s32 %s130, 1
      %p134 = scmp.eq.s32.totalorder %s19, 1
      %p135 = scmp.ne.s32.totalorder %s130, %s132
      %p136 = scmp.eq.s32.totalorder %s19, 0
      %p137 = por %p135, %p136
      %p138 = scmp.ne.s32.totalorder %s130, %s132
      %p139 = scmp.eq.s32.totalorder %s24, 1
      %p140 = por %p138, %p139
      %p141 = scmp.ne.s32.totalorder %s132, %s133
      %p142 = scmp.eq.s32.totalorder %s24, 0
      %p143 = por %p141, %p142
      %p144 = scmp.ne.s32.totalorder %s132, %s133
      %p145 = scmp.eq.s32.totalorder %s25, 1
      %p146 = por %p144, %p145
      %p148 = scmp.ne.s32.totalorder %s133, %s147
      %p149 = scmp.eq.s32.totalorder %s25, 0
      %p150 = por %p148, %p149
      %s151 = ssub.s32 %s26, %s38
      %s152 = ssub.s32 %s27, %s34
      %s153 = sor.u32 %s151, %s152
      %p154 = scmp.eq.s32.totalorder %s153, 0
      %s156 = sadd.s32 %s155, 1
      %s157 = scalar_select %p154, %s155, %s156
      %p160 = pneg %p154
      %p161 = scmp.eq.s32.totalorder %s19, 1
      %p162 = por %p160, %p161
      %p163 = scmp.ne.s32.totalorder %s155, %s158
      %p164 = scmp.eq.s32.totalorder %s19, 0
      %p165 = por %p163, %p164
      %p166 = scmp.ne.s32.totalorder %s155, %s158
      %p167 = scmp.eq.s32.totalorder %s24, 1
      %p168 = por %p166, %p167
      %p169 = scmp.ne.s32.totalorder %s158, %s159
      %p170 = scmp.eq.s32.totalorder %s24, 0
      %p171 = por %p169, %p170
      %p172 = scmp.ne.s32.totalorder %s158, %s159
      %p173 = scmp.eq.s32.totalorder %s25, 1
      %p174 = por %p172, %p173
      %p176 = scmp.ne.s32.totalorder %s159, %s175
      %p177 = scmp.eq.s32.totalorder %s25, 0
      %p178 = por %p176, %p177
      %s179 = ssub.s32 %s26, %s38
      %s180 = ssub.s32 %s27, %s34
      %s181 = sor.u32 %s179, %s180
      %p182 = scmp.eq.s32.totalorder %s181, 0
      %s184 = sadd.s32 %s183, 1
      %s185 = scalar_select %p182, %s183, %s184
      %p188 = pneg %p182
      %p189 = scmp.eq.s32.totalorder %s19, 1
      %p190 = por %p188, %p189
      %p191 = scmp.ne.s32.totalorder %s183, %s186
      %p192 = scmp.eq.s32.totalorder %s19, 0
      %p193 = por %p191, %p192
      %p194 = scmp.ne.s32.totalorder %s183, %s186
      %p195 = scmp.eq.s32.totalorder %s24, 1
      %p196 = por %p194, %p195
      %p197 = scmp.ne.s32.totalorder %s186, %s187
      %p198 = scmp.eq.s32.totalorder %s24, 0
      %p199 = por %p197, %p198
      %p200 = scmp.ne.s32.totalorder %s186, %s187
      %p201 = scmp.eq.s32.totalorder %s25, 1
      %p202 = por %p200, %p201
      %p204 = scmp.ne.s32.totalorder %s187, %s203
      %p205 = scmp.eq.s32.totalorder %s25, 0
      %p206 = por %p204, %p205
      %p207 = scmp.le.s32.totalorder 1, %s19
      %p208 = scmp.lt.s32.totalorder %s19, 3
      %p209 = pnand %p207, %p208
      %p210 = pneg %p209
      // Predicated region
      $region9: #{tpu_custom_call.1} parent=5 // pred_check
        _
      $region10: #{tpu_custom_call.1} parent=5 // pred_check_branch
        %212 = sbr.rel (%p209) target = $region12
      $region11: #{tpu_custom_call.1} parent=5 // pred_region
        %s213 = ssub.s32 %s19, 1
        // Predicated region
        $region13: #{tpu_custom_call.1} parent=11 // pred_check
          %p214 = pneg %p80
        $region14: #{tpu_custom_call.1} parent=11 // pred_check_branch
          %216 = sbr.rel (%p214) target = $region16
        $region15: #{tpu_custom_call.1} parent=11 // pred_region
          _
        $region16: #{tpu_custom_call.1} parent=11 // pred_fallthru
          _
        // Predicated region
        $region17: #{tpu_custom_call.1} parent=11 // pred_check
          %p217 = pneg %p101
        $region18: #{tpu_custom_call.1} parent=11 // pred_check_branch
          %219 = sbr.rel (%p217) target = $region20
        $region19: #{tpu_custom_call.1} parent=11 // pred_region
          _
        $region20: #{tpu_custom_call.1} parent=11 // pred_fallthru
          _
        // Predicated region
        $region21: #{tpu_custom_call.1} parent=11 // pred_check
          %p220 = pneg %p122
        $region22: #{tpu_custom_call.1} parent=11 // pred_check_branch
          %222 = sbr.rel (%p220) target = $region24
        $region23: #{tpu_custom_call.1} parent=11 // pred_region
          _
        $region24: #{tpu_custom_call.1} parent=11 // pred_fallthru
          _
        // Predicated region
        $region25: #{tpu_custom_call.1} parent=11 // pred_check
          %p223 = pneg %p143
        $region26: #{tpu_custom_call.1} parent=11 // pred_check_branch
          %225 = sbr.rel (%p223) target = $region28
        $region27: #{tpu_custom_call.1} parent=11 // pred_region
          _
        $region28: #{tpu_custom_call.1} parent=11 // pred_fallthru
          _
      $region12: #{tpu_custom_call.1} parent=5 // pred_fallthru
        _
      %p226 = scmp.lt.s32.totalorder %s19, 2
      // Predicated region
      $region29: #{tpu_custom_call.1} parent=5 // pred_check
        %p227 = pneg %p226
      $region30: #{tpu_custom_call.1} parent=5 // pred_check_branch
        %229 = sbr.rel (%p227) target = $region32
      $region31: #{tpu_custom_call.1} parent=5 // pred_region
        // Predicated region
        $region33: #{tpu_custom_call.1} parent=31 // pred_check
          %p230 = pneg %p53
        $region34: #{tpu_custom_call.1} parent=31 // pred_check_branch
          %232 = sbr.rel (%p230) target = $region36
        $region35: #{tpu_custom_call.1} parent=31 // pred_region
          %s233 = smul.u32 2, %s27
          %p234 = scmp.lt.s32.totalorder %s26, 1
          %s235 = scalar_select %p234, %s26, 1
          %p236 = scmp.lt.s32.totalorder %s233, 1
          %s237 = scalar_select %p236, %s233, 1
          %s238 = smul.addr %s235, 2
          %s239 = sadd.s32 %s237, %s238
          %s240 = smul.addr %s239, 4
          %s241 = scalar_lea.vmem %s0, %s240
          %s242 = smul.u32 2, %s27
        $region36: #{tpu_custom_call.1} parent=31 // pred_fallthru
          _
      $region32: #{tpu_custom_call.1} parent=5 // pred_fallthru
        _
      %p243 = scmp.le.s32.totalorder 1, %s19
      %p244 = scmp.lt.s32.totalorder %s19, 3
      %p245 = pnand %p243, %p244
      %p246 = pneg %p245
      // Predicated region
      $region37: #{tpu_custom_call.1} parent=5 // pred_check
        _
      $region38: #{tpu_custom_call.1} parent=5 // pred_check_branch
        %248 = sbr.rel (%p245) target = $region40
      $region39: #{tpu_custom_call.1} parent=5 // pred_region
        %s249 = ssub.s32 %s19, 1
        %s250 = smul.u32 2, %s29
        %p251 = scmp.lt.s32.totalorder %s28, 1
        %s252 = scalar_select %p251, %s28, 1
        %p253 = scmp.lt.s32.totalorder %s250, 1
        %s254 = scalar_select %p253, %s250, 1
        %s255 = smul.addr %s252, 2
        %s256 = sadd.s32 %s254, %s255
        %s257 = smul.addr %s256, 4
        %s258 = scalar_lea.vmem %s0, %s257
        %p259 = pneg %p59
        %p260 = pneg %p56
        %p261 = pneg %p80
        %p262 = pneg %p77
        %p263 = pneg %p101
        %p264 = pneg %p98
        %p265 = pneg %p122
        %p266 = pneg %p119
        %p267 = pneg %p143
        %p268 = pneg %p140
        %p269 = pneg %p171
        %p270 = pneg %p168
        %s271 = sand.u32 %s158, 1
        %s272 = scalar_lea.sflag [#allocation3], %s271
        %s273 = sand.u32 %s158, 1
        %s274 = smul.addr %s273, 16
        %s275 = scalar_lea.vmem [#allocation2], %s274
        %p276 = pneg %p199
        %p277 = pneg %p196
        %s278 = sand.u32 %s186, 1
        %s279 = scalar_lea.sflag [#allocation5], %s278
        %s280 = sand.u32 %s186, 1
        %s281 = smul.addr %s280, 32
        %s282 = scalar_lea.vmem [#allocation4], %s281
        %s283 = smul.u32 2, %s29
        %p284 = scmp.lt.s32.totalorder %s28, 1
        %s285 = scalar_select %p284, %s28, 1
        %p286 = scmp.lt.s32.totalorder %s283, 1
        %s287 = scalar_select %p286, %s283, 1
        %s288 = smul.addr %s285, 2
        %s289 = sadd.s32 %s287, %s288
        %s290 = smul.addr %s289, 4
        %s291 = scalar_lea.vmem %s0, %s290
        %s292 = smul.u32 2, %s29
        %s293 = smul.u32 2, %s29
        %s294 = smul.u32 2, %s29
        %v295 = vld [vmem:[%s291] sm:$0xff]
        %v296 = vld [vmem:[%s1] sm:$0xff]
        %v297 = vld [vmem:[%s2] sm:$0xff]
        %299 = vset.pattern.permute.xlu0 0
        %300 = vperm.xlu0 %299, %v297
        %v301 = vpop.permute.xlu0 %300
        %304 = vst [vmem:[#allocation1] ss:$2 sm:$0xff] %v295
        %v305 = vld.sshfl [vmem:[#allocation1] sm:$0xff pattern:$0x75316420]
        %v306 = vld.sshfl [vmem:[#allocation1 + $0x8] sm:$0xff pattern:$0x75316420]
        %vm307 = vcmask 31744
        %v309 = vsel %vm307, %v296, 0
        %vm311 = vcmask 1043456
        %v312 = vsel %vm311, %v305, 0
        %v314 = vsel %vm311, %v306, 0
        %316 = vmatpush.msra.mxu0 0.0
        %317 = vmatpush.msra.mxu0 0.0
        %318 = vmatpush.msra.mxu0 0.0
        %319 = vmatpush.msra.mxu0 0.0
        %320 = vmatpush.msra.mxu0 0.0
        %321 = vmatpush.msra.mxu0 0.0
        %322 = vmatpush.msra.mxu0 0.0
        %323 = vmatpush.msra.mxu0 0.0
        %324 = vmatpush.msra.mxu0 0.0
        %325 = vmatpush.msra.mxu0 0.0
        %326 = vmatpush.msra.mxu0 0.0
        %327 = vmatpush.msra.mxu0 0.0
        %328 = vmatpush.msra.mxu0 0.0
        %329 = vmatpush.msra.mxu0 0.0
        %330 = vmatpush.msra.mxu0 0.0
        %331 = vmatpush.msra.mxu0 %v312
        %332 = vmatmul.f32.gmra.mxu0 %v309
        %v333 = vpop.f32.mrf.mxu0
        %v334 = vadd.f32 %v301, %v333
        %335 = vdwg.mxu0
        %336 = vmatpush.msra.mxu0 0.0
        %337 = vmatpush.msra.mxu0 0.0
        %338 = vmatpush.msra.mxu0 0.0
        %339 = vmatpush.msra.mxu0 0.0
        %340 = vmatpush.msra.mxu0 0.0
        %341 = vmatpush.msra.mxu0 0.0
        %342 = vmatpush.msra.mxu0 0.0
        %343 = vmatpush.msra.mxu0 0.0
        %344 = vmatpush.msra.mxu0 0.0
        %345 = vmatpush.msra.mxu0 0.0
        %346 = vmatpush.msra.mxu0 0.0
        %347 = vmatpush.msra.mxu0 0.0
        %348 = vmatpush.msra.mxu0 0.0
        %349 = vmatpush.msra.mxu0 0.0
        %350 = vmatpush.msra.mxu0 0.0
        %351 = vmatpush.msra.mxu0 %v314
        %352 = vmatmul.f32.gmra.mxu0 %v309
        %v353 = vpop.f32.mrf.mxu0
        %v354 = vadd.f32 %v301, %v353
        %355 = vdwg.mxu0
        %356 = vst [vmem:[%s275] sm:$0xff] %v334
        %357 = vst [vmem:[%s275 + $0x8] sm:$0xff] %v354
        %v358 = vld [vmem:[%s3] sm:$0xff]
        %v359 = vld [vmem:[%s3 + $0x8] sm:$0xff]
        %v360 = vld [vmem:[%s4] sm:$0xff]
        %v361 = vld [vmem:[%s4 + $0x8] sm:$0xff]
        %363 = vset.pattern.permute.xlu0 0
        %364 = vperm.xlu0 %363, %v360
        %v365 = vpop.permute.xlu0 %364
        %368 = vset.pattern.permute.xlu0 0
        %369 = vperm.xlu0 %368, %v361
        %v370 = vpop.permute.xlu0 %369
        %372 = vst [vmem:[#allocation1] ss:$2 sm:$0xff] %v295
        %v373 = vld.sshfl [vmem:[#allocation1] sm:$0xff pattern:$0x75316420]
        %v374 = vld.sshfl [vmem:[#allocation1 + $0x8] sm:$0xff pattern:$0x75316420]
        %v376 = vsel %vm307, %v358, 0
        %v379 = vsel %vm307, %v359, 0
        %v381 = vsel %vm311, %v373, 0
        %v383 = vsel %vm311, %v374, 0
        %385 = vmatpush.msra.mxu0 0.0
        %386 = vmatpush.msra.mxu0 0.0
        %387 = vmatpush.msra.mxu0 0.0
        %388 = vmatpush.msra.mxu0 0.0
        %389 = vmatpush.msra.mxu0 0.0
        %390 = vmatpush.msra.mxu0 0.0
        %391 = vmatpush.msra.mxu0 0.0
        %392 = vmatpush.msra.mxu0 0.0
        %393 = vmatpush.msra.mxu0 0.0
        %394 = vmatpush.msra.mxu0 0.0
        %395 = vmatpush.msra.mxu0 0.0
        %396 = vmatpush.msra.mxu0 0.0
        %397 = vmatpush.msra.mxu0 0.0
        %398 = vmatpush.msra.mxu0 0.0
        %399 = vmatpush.msra.mxu0 0.0
        %400 = vmatpush.msra.mxu0 %v381
        %401 = vmatmul.f32.gmra.mxu0 %v376
        %v402 = vpop.f32.mrf.mxu0
        %v403 = vadd.f32 %v365, %v402
        %404 = vmatmul.f32.gmra.mxu0 %v379
        %v405 = vpop.f32.mrf.mxu0
        %v406 = vadd.f32 %v370, %v405
        %407 = vdwg.mxu0
        %408 = vmatpush.msra.mxu0 0.0
        %409 = vmatpush.msra.mxu0 0.0
        %410 = vmatpush.msra.mxu0 0.0
        %411 = vmatpush.msra.mxu0 0.0
        %412 = vmatpush.msra.mxu0 0.0
        %413 = vmatpush.msra.mxu0 0.0
        %414 = vmatpush.msra.mxu0 0.0
        %415 = vmatpush.msra.mxu0 0.0
        %416 = vmatpush.msra.mxu0 0.0
        %417 = vmatpush.msra.mxu0 0.0
        %418 = vmatpush.msra.mxu0 0.0
        %419 = vmatpush.msra.mxu0 0.0
        %420 = vmatpush.msra.mxu0 0.0
        %421 = vmatpush.msra.mxu0 0.0
        %422 = vmatpush.msra.mxu0 0.0
        %423 = vmatpush.msra.mxu0 %v383
        %424 = vmatmul.f32.gmra.mxu0 %v376
        %v425 = vpop.f32.mrf.mxu0
        %v426 = vadd.f32 %v365, %v425
        %427 = vmatmul.f32.gmra.mxu0 %v379
        %v428 = vpop.f32.mrf.mxu0
        %v429 = vadd.f32 %v370, %v428
        %430 = vdwg.mxu0
        %431 = vst [vmem:[%s282] sm:$0xff] %v403
        %432 = vst [vmem:[%s282 + $0x8] sm:$0xff] %v426
        %433 = vst [vmem:[%s282 + $0x10] sm:$0xff] %v406
        %434 = vst [vmem:[%s282 + $0x18] sm:$0xff] %v429
        %s435 = sand.u32 %s158, 1
        %s436 = scalar_lea.sflag [#allocation3], %s435
        %s437 = sand.u32 %s158, 1
        %s438 = smul.addr %s437, 16
        %s439 = scalar_lea.vmem [#allocation2], %s438
        %s440 = sand.u32 %s186, 1
        %s441 = scalar_lea.sflag [#allocation5], %s440
        %s442 = sand.u32 %s186, 1
        %s443 = smul.addr %s442, 32
        %s444 = scalar_lea.vmem [#allocation4], %s443
        // Predicated region
        $region41: #{tpu_custom_call.1} parent=39 // pred_check
          %p445 = pneg %p168
        $region42: #{tpu_custom_call.1} parent=39 // pred_check_branch
          %447 = sbr.rel (%p445) target = $region44
        $region43: #{tpu_custom_call.1} parent=39 // pred_region
          %s448 = smul.u32 2, %s29
          %450 = vsyncadd %s436, 0
          %s451 = smul.addr %s28, 2
          %s452 = sadd.s32 %s448, %s451
          %s453 = smul.addr %s452, 8
          %s454 = scalar_lea.hbm %s5, %s453
          %s456 = sshll.u32 %s439, 4
          %s457 = int_to_ptr.vmem [resolvable:$true] %s456
          %s458 = sshll.u32 %s454, 4
          %s459 = int_to_ptr.hbm [resolvable:$true] %s458
          %461 = dma.vmem_to_hbm [thread:$0]  %s457, 256, %s459, %s436
        $region44: #{tpu_custom_call.1} parent=39 // pred_fallthru
          _
        // Predicated region
        $region45: #{tpu_custom_call.1} parent=39 // pred_check
          %p462 = pneg %p196
        $region46: #{tpu_custom_call.1} parent=39 // pred_check_branch
          %464 = sbr.rel (%p462) target = $region48
        $region47: #{tpu_custom_call.1} parent=39 // pred_region
          %s465 = smul.u32 2, %s29
          %467 = vsyncadd %s441, 0
          %s468 = smul.addr %s28, 4
          %s469 = sadd.s32 %s465, %s468
          %s470 = smul.addr %s469, 8
          %s471 = scalar_lea.hbm %s6, %s470
          %s472 = sshll.u32 %s444, 4
          %s473 = int_to_ptr.vmem [resolvable:$true] %s472
          %s474 = sshll.u32 %s471, 4
          %s475 = int_to_ptr.hbm [resolvable:$true] %s474
          %480 = dma.vmem_to_hbm [thread:$0]  %s473, 512, %s475, %s441, 256, 256, 16
        $region48: #{tpu_custom_call.1} parent=39 // pred_fallthru
          _
      $region40: #{tpu_custom_call.1} parent=5 // pred_fallthru
        _
      %p481 = scmp.le.s32.totalorder 2, %s19
      // Predicated region
      $region49: #{tpu_custom_call.1} parent=5 // pred_check
        %p482 = pneg %p481
      $region50: #{tpu_custom_call.1} parent=5 // pred_check_branch
        %484 = sbr.rel (%p482) target = $region52
      $region51: #{tpu_custom_call.1} parent=5 // pred_region
        %s485 = ssub.s32 %s19, 2
        // Predicated region
        $region53: #{tpu_custom_call.1} parent=51 // pred_check
          %p486 = pneg %p174
        $region54: #{tpu_custom_call.1} parent=51 // pred_check_branch
          %488 = sbr.rel (%p486) target = $region56
        $region55: #{tpu_custom_call.1} parent=51 // pred_region
          %s489 = sand.u32 %s159, 1
          %s490 = scalar_lea.sflag [#allocation3], %s489
          %s491 = sand.u32 %s159, 1
          %s492 = smul.addr %s491, 16
          %s493 = scalar_lea.vmem [#allocation2], %s492
          %495 = dma.done %s490, 256
        $region56: #{tpu_custom_call.1} parent=51 // pred_fallthru
          _
        // Predicated region
        $region57: #{tpu_custom_call.1} parent=51 // pred_check
          %p496 = pneg %p202
        $region58: #{tpu_custom_call.1} parent=51 // pred_check_branch
          %498 = sbr.rel (%p496) target = $region60
        $region59: #{tpu_custom_call.1} parent=51 // pred_region
          %s499 = sand.u32 %s187, 1
          %s500 = scalar_lea.sflag [#allocation5], %s499
          %s501 = sand.u32 %s187, 1
          %s502 = smul.addr %s501, 32
          %s503 = scalar_lea.vmem [#allocation4], %s502
          %505 = dma.done %s500, 512
        $region60: #{tpu_custom_call.1} parent=51 // pred_fallthru
          _
      $region52: #{tpu_custom_call.1} parent=5 // pred_fallthru
        _
    $region6: #{tpu_custom_call.1} parent=1 // loop_footer
      %s23 = sadd.s32 1, %s19
    $region7: #{tpu_custom_call.1} parent=1 // loop_footer_branch
      %18 = sbr.rel target = $region3
    $region8: #{tpu_custom_call.1} parent=1 // loop_exit
      _
    %506 = vsyncpa [#allocation3], 1
    %s507 = scalar_lea.sflag [#allocation3], 1
    %508 = vsyncpa %s507, 1
    %509 = vsyncpa [#allocation5], 1
    %s510 = scalar_lea.sflag [#allocation5], 1
    %511 = vsyncpa %s510, 1

</llo_original>
